<compile_context>
chip_gen: v7x
topology: tpu7x:2x2x1
jax: 0.10.0
libtpu: 0.0.40
codegen_flags: <defaults>
</compile_context>

<pallas_src>
import jax
import jax.numpy as jnp
from jax.experimental import pallas as pl
from jax.experimental.pallas import tpu as pltpu


def _round_up(x, m):
    return ((x + m - 1) // m) * m


def actor_mlp_kernel(x_ref, w1_ref, w2_ref, w3_ref, b_ref, mu_ref):
    hidden = w1_ref.shape[1]
    num_outputs = mu_ref.shape[-1]

    # Packed biases: row 0 = b1, row 1 = b2, row 2 = b3 (zero padded to pad_f).
    b = b_ref[...]                                   # (3, pad_f) f32
    b1 = b[0:1, :hidden]                             # (1, hidden)
    b2 = b[1:2, :hidden]                             # (1, hidden)
    b3 = b[2:3, :num_outputs]                        # (1, num_outputs)

    x = x_ref[...]                                   # (TB, num_inputs) f32
    h1 = jnp.tanh(
        jnp.dot(x, w1_ref[...], preferred_element_type=jnp.float32) + b1)
    h2 = jnp.tanh(
        jnp.dot(h1, w2_ref[...], preferred_element_type=jnp.float32) + b2)
    mu = jnp.dot(h2, w3_ref[...], preferred_element_type=jnp.float32) + b3
    mu_ref[...] = mu.astype(mu_ref.dtype)            # true-width (TB, num_outputs)


def _num_tensorcores():
    """2 TensorCores on v7x; 1 on v5e / v6e.  Conservative fallback = 1."""
    try:
        kind = jax.devices()[0].device_kind.lower()
        if "v7" in kind or "7x" in kind:
            return 2
    except Exception:
        pass
    return 1


def _pick_tile_b(batch, num_tc):
    """Single grid step on single-TC chips / tiny batches; two balanced steps
    (larger cap) on dual-TC v7x."""
    b8 = max(_round_up(batch, 8), 8)
    if num_tc <= 1 or b8 < 64:
        # One step per call; VMEM is nowhere near a constraint at these widths.
        return min(b8, 32768)
    # Dual-TC: split the batch exactly in half (rounded to 8) so the two
    # "parallel" steps are balanced across the TensorCores.
    return min(4096, _round_up(pl.cdiv(b8, 2), 8))


def prepare_actor_params(params):
    """One-time packing of parameters (hoisted out of the per-forward path)."""
    w1, b1, w2, b2, w3, b3, log_std = params
    hidden = w1.shape[1]
    num_outputs = w3.shape[1]

    pad_f = max(hidden, num_outputs)
    b_pack = jnp.zeros((3, pad_f), jnp.float32)
    b_pack = b_pack.at[0, :hidden].set(b1)
    b_pack = b_pack.at[1, :hidden].set(b2)
    b_pack = b_pack.at[2, :num_outputs].set(b3)

    # cov_mat = torch.diag_embed(self.log_std) — constant across forwards.
    cov_mat = jnp.diag(log_std)
    return (w1, w2, w3, b_pack, cov_mat)


def actor_forward(x, prepared, *, tile_b=None):
    """Returns (mu, cov_mat) — the parameters of the MultivariateNormal dist."""
    w1, w2, w3, b_pack, cov_mat = prepared
    B, num_inputs = x.shape
    hidden = w1.shape[1]
    num_outputs = w3.shape[1]
    pad_f = b_pack.shape[1]

    if tile_b is None:
        tile_b = _pick_tile_b(B, _num_tensorcores())
    tile_b = max(_round_up(tile_b, 8), 8)
    num_tiles = pl.cdiv(B, tile_b)

    mu = pl.pallas_call(
        actor_mlp_kernel,
        out_shape=jax.ShapeDtypeStruct((B, num_outputs), jnp.float32),
        grid_spec=pltpu.PrefetchScalarGridSpec(
            num_scalar_prefetch=0,
            grid=(num_tiles,),
            in_specs=[
                # batch tile of activations (ragged edge handled by Pallas)
                pl.BlockSpec((tile_b, num_inputs), lambda i: (i, 0)),
                # weights / packed biases: full arrays, constant block index
                # -> fetched into VMEM once for the whole grid.
                pl.BlockSpec((num_inputs, hidden), lambda i: (0, 0)),
                pl.BlockSpec((hidden, hidden), lambda i: (0, 0)),
                pl.BlockSpec((hidden, num_outputs), lambda i: (0, 0)),
                pl.BlockSpec((3, pad_f), lambda i: (0, 0)),
            ],
            # True-width output block: last dim equals the full array dim.
            out_specs=pl.BlockSpec((tile_b, num_outputs), lambda i: (i, 0)),
        ),
        compiler_params=pltpu.CompilerParams(
            dimension_semantics=("parallel",)),
    )(x, w1, w2, w3, b_pack)

    return mu, cov_mat


def init_actor_params(key, num_inputs, num_outputs, hidden_size, std=0.1):
    """Deterministic init mimicking nn.Linear (uniform ±1/sqrt(fan_in))."""
    ks = jax.random.split(key, 6)

    def linear(kw, kb, fan_in, fan_out):
        bound = 1.0 / jnp.sqrt(fan_in)
        # stored as (in, out) -> kernel does x @ W
        w = jax.random.uniform(kw, (fan_in, fan_out), jnp.float32, -bound, bound)
        b = jax.random.uniform(kb, (fan_out,), jnp.float32, -bound, bound)
        return w, b

    w1, b1 = linear(ks[0], ks[1], num_inputs, hidden_size)
    w2, b2 = linear(ks[2], ks[3], hidden_size, hidden_size)
    w3, b3 = linear(ks[4], ks[5], hidden_size, num_outputs)
    log_std = jnp.full((num_outputs,), std * std, dtype=jnp.float32)
    return (w1, b1, w2, b2, w3, b3, log_std)


def actor_reference(x, params):
    w1, b1, w2, b2, w3, b3, log_std = params
    h1 = jnp.tanh(x @ w1 + b1)
    h2 = jnp.tanh(h1 @ w2 + b2)
    mu = h2 @ w3 + b3
    return mu, jnp.diag(log_std)


if __name__ == "__main__":
    num_inputs, num_outputs, hidden_size = 16, 4, 32

    key = jax.random.PRNGKey(0)
    kx, kp, kx2 = jax.random.split(key, 3)
    params = init_actor_params(kp, num_inputs, num_outputs, hidden_size)
    prepared = prepare_actor_params(params)   # packing hoisted out of forward

    # Case 1: small batch -> single grid step.
    batch = 16
    x = jax.random.normal(kx, (batch, num_inputs), dtype=jnp.float32)
    mu, cov_mat = actor_forward(x, prepared)
    mu = jax.block_until_ready(mu)
    cov_mat = jax.block_until_ready(cov_mat)

    mu_ref, cov_ref = actor_reference(x, params)
    assert mu.shape == (batch, num_outputs)
    assert cov_mat.shape == (num_outputs, num_outputs)
    assert jnp.allclose(mu, mu_ref, atol=1e-5, rtol=1e-5)
    assert jnp.allclose(cov_mat, cov_ref)

    # Case 2: ragged batch (not a multiple of 8) -> no wrapper padding; Pallas
    # handles the partial edge block (garbage rows computed then discarded).
    batch2 = 100
    x2 = jax.random.normal(kx2, (batch2, num_inputs), dtype=jnp.float32)
    mu2, _ = actor_forward(x2, prepared)
    mu2 = jax.block_until_ready(mu2)
    mu2_ref, _ = actor_reference(x2, params)
    assert mu2.shape == (batch2, num_outputs)
    assert jnp.allclose(mu2, mu2_ref, atol=1e-5, rtol=1e-5)

    print("KERNEL_OK")
</pallas_src>

<mosaic_0001>
module attributes {stable_mosaic.version = 11 : i64} {
  func.func @actor_mlp_kernel(%arg0: i32, %arg1: memref<16x16xf32, #tpu.memory_space<vmem>>, %arg2: memref<16x32xf32, #tpu.memory_space<vmem>>, %arg3: memref<32x32xf32, #tpu.memory_space<vmem>>, %arg4: memref<32x4xf32, #tpu.memory_space<vmem>>, %arg5: memref<3x32xf32, #tpu.memory_space<vmem>>, %arg6: memref<16x4xf32, #tpu.memory_space<vmem>>) attributes {dimension_semantics = [#tpu.dimension_semantics<parallel>], iteration_bounds = array<i64: 1>, scalar_prefetch = 0 : i64, scratch_operands = 0 : i64, tpu.core_type = #tpu.core_type<tc>, window_params = [{transform_indices = @transform_0, window_bounds = array<i64: 16, 16>}, {pipeline_mode = #tpu.pipeline_mode<synchronous>, transform_indices = @transform_1, window_bounds = array<i64: 16, 32>}, {pipeline_mode = #tpu.pipeline_mode<synchronous>, transform_indices = @transform_2, window_bounds = array<i64: 32, 32>}, {pipeline_mode = #tpu.pipeline_mode<synchronous>, transform_indices = @transform_3, window_bounds = array<i64: 32, 4>}, {pipeline_mode = #tpu.pipeline_mode<synchronous>, transform_indices = @transform_4, window_bounds = array<i64: 3, 32>}, {transform_indices = @transform_5, window_bounds = array<i64: 16, 4>}]} {
    %c0 = arith.constant 0 : index
    %c0_0 = arith.constant 0 : index
    %0 = vector.load %arg5[%c0, %c0_0] : memref<3x32xf32, #tpu.memory_space<vmem>>, vector<3x32xf32>
    %1 = vector.extract_strided_slice %0 {offsets = [0, 0], sizes = [1, 32], strides = [1, 1]} : vector<3x32xf32> to vector<1x32xf32>
    %2 = vector.extract_strided_slice %0 {offsets = [1, 0], sizes = [1, 32], strides = [1, 1]} : vector<3x32xf32> to vector<1x32xf32>
    %3 = vector.extract_strided_slice %0 {offsets = [2, 0], sizes = [1, 4], strides = [1, 1]} : vector<3x32xf32> to vector<1x4xf32>
    %c0_1 = arith.constant 0 : index
    %c0_2 = arith.constant 0 : index
    %4 = vector.load %arg1[%c0_1, %c0_2] : memref<16x16xf32, #tpu.memory_space<vmem>>, vector<16x16xf32>
    %c0_3 = arith.constant 0 : index
    %c0_4 = arith.constant 0 : index
    %5 = vector.load %arg2[%c0_3, %c0_4] : memref<16x32xf32, #tpu.memory_space<vmem>>, vector<16x32xf32>
    %cst = arith.constant dense<0.000000e+00> : vector<16x32xf32>
    %6 = tpu.matmul %4, %5, %cst {dimension_numbers = #tpu.dot_dimension_numbers<[1], [0], [0], [1], [0, 0, 1, 1], [], []>} : vector<16x16xf32>, vector<16x32xf32>, vector<16x32xf32> -> vector<16x32xf32>
    %7 = vector.broadcast %1 : vector<1x32xf32> to vector<16x32xf32>
    %8 = arith.addf %6, %7 : vector<16x32xf32>
    %9 = math.tanh %8 : vector<16x32xf32>
    %c0_5 = arith.constant 0 : index
    %c0_6 = arith.constant 0 : index
    %10 = vector.load %arg3[%c0_5, %c0_6] : memref<32x32xf32, #tpu.memory_space<vmem>>, vector<32x32xf32>
    %cst_7 = arith.constant dense<0.000000e+00> : vector<16x32xf32>
    %11 = tpu.matmul %9, %10, %cst_7 {dimension_numbers = #tpu.dot_dimension_numbers<[1], [0], [0], [1], [0, 0, 1, 1], [], []>} : vector<16x32xf32>, vector<32x32xf32>, vector<16x32xf32> -> vector<16x32xf32>
    %12 = vector.broadcast %2 : vector<1x32xf32> to vector<16x32xf32>
    %13 = arith.addf %11, %12 : vector<16x32xf32>
    %14 = math.tanh %13 : vector<16x32xf32>
    %c0_8 = arith.constant 0 : index
    %c0_9 = arith.constant 0 : index
    %15 = vector.load %arg4[%c0_8, %c0_9] : memref<32x4xf32, #tpu.memory_space<vmem>>, vector<32x4xf32>
    %cst_10 = arith.constant dense<0.000000e+00> : vector<16x4xf32>
    %16 = tpu.matmul %14, %15, %cst_10 {dimension_numbers = #tpu.dot_dimension_numbers<[1], [0], [0], [1], [0, 0, 1, 1], [], []>} : vector<16x32xf32>, vector<32x4xf32>, vector<16x4xf32> -> vector<16x4xf32>
    %17 = vector.broadcast %3 : vector<1x4xf32> to vector<16x4xf32>
    %18 = arith.addf %16, %17 : vector<16x4xf32>
    %c0_11 = arith.constant 0 : index
    %c0_12 = arith.constant 0 : index
    %19 = vector.load %arg6[%c0_11, %c0_12] : memref<16x4xf32, #tpu.memory_space<vmem>>, vector<16x4xf32>
    tpu.vector_store %arg6[%c0_11, %c0_12], %18 {strides = array<i32>} : memref<16x4xf32, #tpu.memory_space<vmem>>, vector<16x4xf32>,
    return
  }
  func.func @transform_0(%arg0: i32) -> (i32, i32) {
    %c0_i32 = arith.constant 0 : i32
    %c0_i32_0 = arith.constant 0 : i32
    return %arg0, %c0_i32 : i32, i32
  }
  func.func @transform_1(%arg0: i32) -> (i32, i32) {
    %c0_i32 = arith.constant 0 : i32
    %c0_i32_0 = arith.constant 0 : i32
    %c0_i32_1 = arith.constant 0 : i32
    return %c0_i32, %c0_i32_0 : i32, i32
  }
  func.func @transform_2(%arg0: i32) -> (i32, i32) {
    %c0_i32 = arith.constant 0 : i32
    %c0_i32_0 = arith.constant 0 : i32
    %c0_i32_1 = arith.constant 0 : i32
    return %c0_i32, %c0_i32_0 : i32, i32
  }
  func.func @transform_3(%arg0: i32) -> (i32, i32) {
    %c0_i32 = arith.constant 0 : i32
    %c0_i32_0 = arith.constant 0 : i32
    %c0_i32_1 = arith.constant 0 : i32
    return %c0_i32, %c0_i32_0 : i32, i32
  }
  func.func @transform_4(%arg0: i32) -> (i32, i32) {
    %c0_i32 = arith.constant 0 : i32
    %c0_i32_0 = arith.constant 0 : i32
    %c0_i32_1 = arith.constant 0 : i32
    return %c0_i32, %c0_i32_0 : i32, i32
  }
  func.func @transform_5(%arg0: i32) -> (i32, i32) {
    %c0_i32 = arith.constant 0 : i32
    %c0_i32_0 = arith.constant 0 : i32
    return %arg0, %c0_i32 : i32, i32
  }
}

</mosaic_0001>

<llo_original>
// kernel: tpu_custom_call.1
$region0: #{tpu_custom_call.1}
  #allocation0 [shape = 'u32[]', space=smem, size = 0x4, offset = 0x4, fixed_abs, tag = 'smem constant byte address 0x4 - core index']
  #allocation1 [shape = 'u32[144,128]{1,0:T(1,128)}', space=vmem, size = 0x12000, scoped, tag = 'internal scratch']
  %s0 = inlined_call_operand.hbm [shape: f32[16,16], index: 0, kind: input, shape index: {}]
  %s1 = inlined_call_operand.hbm [shape: f32[16,32], index: 1, kind: input, shape index: {}]
  %s2 = inlined_call_operand.vmem [shape: f32[32,32], index: 2, kind: input, shape index: {}]
  %s3 = inlined_call_operand.vmem [shape: f32[32,4], index: 3, kind: input, shape index: {}]
  %s4 = inlined_call_operand.vmem [shape: f32[3,32], index: 4, kind: input, shape index: {}]
  %s5 = inlined_call_operand.vmem [shape: f32[16,4], index: 5, kind: output, shape index: {}]
  %s6 = sld [smem:[#allocation0]]
  $region38: #{tpu_custom_call.1} parent=0
    _
  %s8 = ssub.s32 1, %s6
  %s9 = scalar_select 0, %s8, %s6
  $region1: #{tpu_custom_call.1} parent=0
    #allocation2 [shape = 'u8[8192]{0}', space=vmem, size = 0x2000, scoped, tag = 'input window, operand 0, single buffered']
    #allocation3 [shape = 's32[1]{0}', space=sflag, size = 0x4, scoped, tag = 'scoped memory for tpu_custom_call.1']
    #allocation4 [shape = 'u8[8192]{0}', space=vmem, size = 0x2000, scoped, tag = 'input window, operand 1, single buffered']
    #allocation5 [shape = 's32[1]{0}', space=sflag, size = 0x4, scoped, tag = 'scoped memory for tpu_custom_call.1']
    %10 = vsyncpa [#allocation3], 0
    %11 = vsyncpa [#allocation5], 0
    // Predicated region
    $region2: #{tpu_custom_call.1} parent=1 // pred_check
      _
    $region3: #{tpu_custom_call.1} parent=1 // pred_check_branch
      %13 = sbr.rel (0) target = $region5
    $region4: #{tpu_custom_call.1} parent=1 // pred_region
      %s15 = ssub.s32 256, 256
      %16 = vsyncadd [#allocation3], %s15
      %s17 = sshll.u32 [#allocation2], 4
      %s18 = int_to_ptr.vmem [resolvable:$true] %s17
      %23 = dma.hbm_to_vmem [thread:$0]  %s0, 256, %s18, [#allocation3], 128, 128, 8
    $region5: #{tpu_custom_call.1} parent=1 // pred_fallthru
      _
    // Predicated region
    $region6: #{tpu_custom_call.1} parent=1 // pred_check
      _
    $region7: #{tpu_custom_call.1} parent=1 // pred_check_branch
      %25 = sbr.rel (0) target = $region9
    $region8: #{tpu_custom_call.1} parent=1 // pred_region
      %s27 = ssub.s32 256, 256
      %28 = vsyncadd [#allocation5], %s27
      %s29 = sshll.u32 [#allocation4], 4
      %s30 = int_to_ptr.vmem [resolvable:$true] %s29
      %35 = dma.hbm_to_vmem [thread:$0]  %s1, 256, %s30, [#allocation5], 128, 128, 8
    $region9: #{tpu_custom_call.1} parent=1 // pred_fallthru
      _
    // Predicated region
    $region10: #{tpu_custom_call.1} parent=1 // pred_check
      _
    $region11: #{tpu_custom_call.1} parent=1 // pred_check_branch
      %37 = sbr.rel (0) target = $region13
    $region12: #{tpu_custom_call.1} parent=1 // pred_region
      _
    $region13: #{tpu_custom_call.1} parent=1 // pred_fallthru
      _
    // Predicated region
    $region14: #{tpu_custom_call.1} parent=1 // pred_check
      _
    $region15: #{tpu_custom_call.1} parent=1 // pred_check_branch
      %39 = sbr.rel (0) target = $region17
    $region16: #{tpu_custom_call.1} parent=1 // pred_region
      _
    $region17: #{tpu_custom_call.1} parent=1 // pred_fallthru
      _
    // Predicated region
    $region18: #{tpu_custom_call.1} parent=1 // pred_check
      _
    $region19: #{tpu_custom_call.1} parent=1 // pred_check_branch
      %41 = sbr.rel (0) target = $region21
    $region20: #{tpu_custom_call.1} parent=1 // pred_region
      _
    $region21: #{tpu_custom_call.1} parent=1 // pred_fallthru
      _
    // Predicated region
    $region22: #{tpu_custom_call.1} parent=1 // pred_check
      _
    $region23: #{tpu_custom_call.1} parent=1 // pred_check_branch
      %43 = sbr.rel (0) target = $region25
    $region24: #{tpu_custom_call.1} parent=1 // pred_region
      %44 = dma.done [#allocation3], 256
    $region25: #{tpu_custom_call.1} parent=1 // pred_fallthru
      _
    // Predicated region
    $region26: #{tpu_custom_call.1} parent=1 // pred_check
      _
    $region27: #{tpu_custom_call.1} parent=1 // pred_check_branch
      %46 = sbr.rel (0) target = $region29
    $region28: #{tpu_custom_call.1} parent=1 // pred_region
      %47 = dma.done [#allocation5], 256
    $region29: #{tpu_custom_call.1} parent=1 // pred_fallthru
      _
    %v48 = vld [vmem:[%s4] sm:$0x7]
    %v49 = vld [vmem:[#allocation2] sm:$0xff]
    %v50 = vld [vmem:[#allocation2 + $0x8] sm:$0xff]
    %v51 = vld [vmem:[#allocation4] sm:$0xff]
    %v52 = vld [vmem:[#allocation4 + $0x8] sm:$0xff]
    %v53 = vlaneseq
    %v54 = vshrl.u32 %v53, 7
    %v55 = vsub.s32 0, %v54
    %v56 = vrot.slane %v48, %v55
    %vm57 = vcmask 130048
    %v59 = vsel %vm57, %v49, 0
    %v62 = vsel %vm57, %v50, 0
    %64 = vmatprep.subr.mxu0 0.0
    %65 = vmatpush1.msra.mxu0 %v51
    %66 = vmatprep.subr.mxu0 0.0
    %67 = vmatpush1.msra.mxu0 %v52
    %68 = vmatprep.subr.mxu0 0.0
    %69 = vmatpush1.msra.mxu0 0.0
    %70 = vmatprep.subr.mxu0 0.0
    %71 = vmatpush1.msra.mxu0 0.0
    %72 = vmatprep.subr.mxu0 0.0
    %73 = vmatpush1.msra.mxu0 0.0
    %74 = vmatprep.subr.mxu0 0.0
    %75 = vmatpush1.msra.mxu0 0.0
    %76 = vmatprep.subr.mxu0 0.0
    %77 = vmatpush1.msra.mxu0 0.0
    %78 = vmatprep.subr.mxu0 0.0
    %79 = vmatpush1.msra.mxu0 0.0
    %80 = vmatprep.subr.mxu0 0.0
    %81 = vmatpush1.msra.mxu0 0.0
    %82 = vmatprep.subr.mxu0 0.0
    %83 = vmatpush1.msra.mxu0 0.0
    %84 = vmatprep.subr.mxu0 0.0
    %85 = vmatpush1.msra.mxu0 0.0
    %86 = vmatprep.subr.mxu0 0.0
    %87 = vmatpush1.msra.mxu0 0.0
    %88 = vmatprep.subr.mxu0 0.0
    %89 = vmatpush1.msra.mxu0 0.0
    %90 = vmatprep.subr.mxu0 0.0
    %91 = vmatpush1.msra.mxu0 0.0
    %92 = vmatprep.subr.mxu0 0.0
    %93 = vmatpush1.msra.mxu0 0.0
    %94 = vmatprep.subr.mxu0 0.0
    %95 = vmatpush1.msra.mxu0 0.0
    %96 = vmatprep.subr.mxu0 0.0
    %97 = vmatpush1.msra.mxu0 0.0
    %98 = vmatprep.subr.mxu0 0.0
    %99 = vmatpush1.msra.mxu0 0.0
    %100 = vmatprep.subr.mxu0 0.0
    %101 = vmatpush1.msra.mxu0 0.0
    %102 = vmatprep.subr.mxu0 0.0
    %103 = vmatpush1.msra.mxu0 0.0
    %104 = vmatprep.subr.mxu0 0.0
    %105 = vmatpush1.msra.mxu0 0.0
    %106 = vmatprep.subr.mxu0 0.0
    %107 = vmatpush1.msra.mxu0 0.0
    %108 = vmatprep.subr.mxu0 0.0
    %109 = vmatpush1.msra.mxu0 0.0
    %110 = vmatprep.subr.mxu0 0.0
    %111 = vmatpush1.msra.mxu0 0.0
    %112 = vmatprep.subr.mxu0 0.0
    %113 = vmatpush1.msra.mxu0 0.0
    %114 = vmatprep.subr.mxu0 0.0
    %115 = vmatpush1.msra.mxu0 0.0
    %116 = vmatprep.subr.mxu0 0.0
    %117 = vmatpush1.msra.mxu0 0.0
    %118 = vmatprep.subr.mxu0 0.0
    %119 = vmatpush1.msra.mxu0 0.0
    %120 = vmatprep.subr.mxu0 0.0
    %121 = vmatpush1.msra.mxu0 0.0
    %122 = vmatprep.subr.mxu0 0.0
    %123 = vmatpush1.msra.mxu0 0.0
    %124 = vmatprep.subr.mxu0 0.0
    %125 = vmatpush1.msra.mxu0 0.0
    %126 = vmatprep.subr.mxu0 0.0
    %127 = vmatpush1.msra.mxu0 0.0
    %128 = vmatprep.mubr.f32.mxu0 0.0
    %129 = vmatmul.mubr.f32.gmra.mrb[0].mxu0 %v59
    %v130 = vpop.f32.mrb[0].mxu0
    %v131 = vadd.f32 %v56, %v130
    %v132 = vpop.f32.mrb[0].mxu0
    %133 = vmatprep.mubr.f32.mxu0 0.0
    %134 = vmatmul.mubr.f32.gmra.mrb[0].mxu0 %v62
    %v135 = vpop.f32.mrb[0].mxu0
    %v136 = vadd.f32 %v56, %v135
    %v137 = vpop.f32.mrb[0].mxu0
    %138 = vdwg.mxu0
    %v139 = vtanh.pop %v131
    %v140 = vtanh.pop %v136
    %v141 = vld [vmem:[%s2] sm:$0xff]
    %v142 = vld [vmem:[%s2 + $0x8] sm:$0xff]
    %v143 = vld [vmem:[%s2 + $0x10] sm:$0xff]
    %v144 = vld [vmem:[%s2 + $0x18] sm:$0xff]
    %v145 = vlaneseq
    %v146 = vshrl.u32 %v145, 7
    %v147 = vsub.s32 1, %v146
    %v148 = vrot.slane %v48, %v147
    %vm149 = vcmask 261120
    %v151 = vsel %vm149, %v139, 0
    %v154 = vsel %vm149, %v140, 0
    %156 = vmatprep.subr.mxu0 0.0
    %157 = vmatpush1.msra.mxu0 %v141
    %158 = vmatprep.subr.mxu0 0.0
    %159 = vmatpush1.msra.mxu0 %v142
    %160 = vmatprep.subr.mxu0 0.0
    %161 = vmatpush1.msra.mxu0 %v143
    %162 = vmatprep.subr.mxu0 0.0
    %163 = vmatpush1.msra.mxu0 %v144
    %164 = vmatprep.subr.mxu0 0.0
    %165 = vmatpush1.msra.mxu0 0.0
    %166 = vmatprep.subr.mxu0 0.0
    %167 = vmatpush1.msra.mxu0 0.0
    %168 = vmatprep.subr.mxu0 0.0
    %169 = vmatpush1.msra.mxu0 0.0
    %170 = vmatprep.subr.mxu0 0.0
    %171 = vmatpush1.msra.mxu0 0.0
    %172 = vmatprep.subr.mxu0 0.0
    %173 = vmatpush1.msra.mxu0 0.0
    %174 = vmatprep.subr.mxu0 0.0
    %175 = vmatpush1.msra.mxu0 0.0
    %176 = vmatprep.subr.mxu0 0.0
    %177 = vmatpush1.msra.mxu0 0.0
    %178 = vmatprep.subr.mxu0 0.0
    %179 = vmatpush1.msra.mxu0 0.0
    %180 = vmatprep.subr.mxu0 0.0
    %181 = vmatpush1.msra.mxu0 0.0
    %182 = vmatprep.subr.mxu0 0.0
    %183 = vmatpush1.msra.mxu0 0.0
    %184 = vmatprep.subr.mxu0 0.0
    %185 = vmatpush1.msra.mxu0 0.0
    %186 = vmatprep.subr.mxu0 0.0
    %187 = vmatpush1.msra.mxu0 0.0
    %188 = vmatprep.subr.mxu0 0.0
    %189 = vmatpush1.msra.mxu0 0.0
    %190 = vmatprep.subr.mxu0 0.0
    %191 = vmatpush1.msra.mxu0 0.0
    %192 = vmatprep.subr.mxu0 0.0
    %193 = vmatpush1.msra.mxu0 0.0
    %194 = vmatprep.subr.mxu0 0.0
    %195 = vmatpush1.msra.mxu0 0.0
    %196 = vmatprep.subr.mxu0 0.0
    %197 = vmatpush1.msra.mxu0 0.0
    %198 = vmatprep.subr.mxu0 0.0
    %199 = vmatpush1.msra.mxu0 0.0
    %200 = vmatprep.subr.mxu0 0.0
    %201 = vmatpush1.msra.mxu0 0.0
    %202 = vmatprep.subr.mxu0 0.0
    %203 = vmatpush1.msra.mxu0 0.0
    %204 = vmatprep.subr.mxu0 0.0
    %205 = vmatpush1.msra.mxu0 0.0
    %206 = vmatprep.subr.mxu0 0.0
    %207 = vmatpush1.msra.mxu0 0.0
    %208 = vmatprep.subr.mxu0 0.0
    %209 = vmatpush1.msra.mxu0 0.0
    %210 = vmatprep.subr.mxu0 0.0
    %211 = vmatpush1.msra.mxu0 0.0
    %212 = vmatprep.subr.mxu0 0.0
    %213 = vmatpush1.msra.mxu0 0.0
    %214 = vmatprep.subr.mxu0 0.0
    %215 = vmatpush1.msra.mxu0 0.0
    %216 = vmatprep.subr.mxu0 0.0
    %217 = vmatpush1.msra.mxu0 0.0
    %218 = vmatprep.subr.mxu0 0.0
    %219 = vmatpush1.msra.mxu0 0.0
    %220 = vmatprep.mubr.f32.mxu0 0.0
    %221 = vmatmul.mubr.f32.gmra.mrb[0].mxu0 %v151
    %v222 = vpop.f32.mrb[0].mxu0
    %v223 = vadd.f32 %v148, %v222
    %v224 = vpop.f32.mrb[0].mxu0
    %225 = vmatprep.mubr.f32.mxu0 0.0
    %226 = vmatmul.mubr.f32.gmra.mrb[0].mxu0 %v154
    %v227 = vpop.f32.mrb[0].mxu0
    %v228 = vadd.f32 %v148, %v227
    %v229 = vpop.f32.mrb[0].mxu0
    %230 = vdwg.mxu0
    %v231 = vtanh.pop %v223
    %v232 = vtanh.pop %v228
    %v233 = vld [vmem:[%s3] sm:$0xff]
    %v234 = vld [vmem:[%s3 + $0x8] sm:$0xff]
    %v235 = vld [vmem:[%s3 + $0x10] sm:$0xff]
    %v236 = vld [vmem:[%s3 + $0x18] sm:$0xff]
    %v237 = vlaneseq
    %v238 = vshrl.u32 %v237, 7
    %v239 = vsub.s32 2, %v238
    %v240 = vrot.slane %v48, %v239
    %v242 = vsel %vm149, %v231, 0
    %v245 = vsel %vm149, %v232, 0
    %247 = vmatprep.subr.mxu0 0.0
    %248 = vmatpush1.msra.mxu0 %v233
    %249 = vmatprep.subr.mxu0 0.0
    %250 = vmatpush1.msra.mxu0 %v234
    %251 = vmatprep.subr.mxu0 0.0
    %252 = vmatpush1.msra.mxu0 %v235
    %253 = vmatprep.subr.mxu0 0.0
    %254 = vmatpush1.msra.mxu0 %v236
    %255 = vmatprep.subr.mxu0 0.0
    %256 = vmatpush1.msra.mxu0 0.0
    %257 = vmatprep.subr.mxu0 0.0
    %258 = vmatpush1.msra.mxu0 0.0
    %259 = vmatprep.subr.mxu0 0.0
    %260 = vmatpush1.msra.mxu0 0.0
    %261 = vmatprep.subr.mxu0 0.0
    %262 = vmatpush1.msra.mxu0 0.0
    %263 = vmatprep.subr.mxu0 0.0
    %264 = vmatpush1.msra.mxu0 0.0
    %265 = vmatprep.subr.mxu0 0.0
    %266 = vmatpush1.msra.mxu0 0.0
    %267 = vmatprep.subr.mxu0 0.0
    %268 = vmatpush1.msra.mxu0 0.0
    %269 = vmatprep.subr.mxu0 0.0
    %270 = vmatpush1.msra.mxu0 0.0
    %271 = vmatprep.subr.mxu0 0.0
    %272 = vmatpush1.msra.mxu0 0.0
    %273 = vmatprep.subr.mxu0 0.0
    %274 = vmatpush1.msra.mxu0 0.0
    %275 = vmatprep.subr.mxu0 0.0
    %276 = vmatpush1.msra.mxu0 0.0
    %277 = vmatprep.subr.mxu0 0.0
    %278 = vmatpush1.msra.mxu0 0.0
    %279 = vmatprep.subr.mxu0 0.0
    %280 = vmatpush1.msra.mxu0 0.0
    %281 = vmatprep.subr.mxu0 0.0
    %282 = vmatpush1.msra.mxu0 0.0
    %283 = vmatprep.subr.mxu0 0.0
    %284 = vmatpush1.msra.mxu0 0.0
    %285 = vmatprep.subr.mxu0 0.0
    %286 = vmatpush1.msra.mxu0 0.0
    %287 = vmatprep.subr.mxu0 0.0
    %288 = vmatpush1.msra.mxu0 0.0
    %289 = vmatprep.subr.mxu0 0.0
    %290 = vmatpush1.msra.mxu0 0.0
    %291 = vmatprep.subr.mxu0 0.0
    %292 = vmatpush1.msra.mxu0 0.0
    %293 = vmatprep.subr.mxu0 0.0
    %294 = vmatpush1.msra.mxu0 0.0
    %295 = vmatprep.subr.mxu0 0.0
    %296 = vmatpush1.msra.mxu0 0.0
    %297 = vmatprep.subr.mxu0 0.0
    %298 = vmatpush1.msra.mxu0 0.0
    %299 = vmatprep.subr.mxu0 0.0
    %300 = vmatpush1.msra.mxu0 0.0
    %301 = vmatprep.subr.mxu0 0.0
    %302 = vmatpush1.msra.mxu0 0.0
    %303 = vmatprep.subr.mxu0 0.0
    %304 = vmatpush1.msra.mxu0 0.0
    %305 = vmatprep.subr.mxu0 0.0
    %306 = vmatpush1.msra.mxu0 0.0
    %307 = vmatprep.subr.mxu0 0.0
    %308 = vmatpush1.msra.mxu0 0.0
    %309 = vmatprep.subr.mxu0 0.0
    %310 = vmatpush1.msra.mxu0 0.0
    %311 = vmatprep.mubr.f32.mxu0 0.0
    %312 = vmatmul.mubr.f32.gmra.mrb[0].mxu0 %v242
    %v313 = vpop.f32.mrb[0].mxu0
    %v314 = vadd.f32 %v240, %v313
    %v315 = vpop.f32.mrb[0].mxu0
    %316 = vmatprep.mubr.f32.mxu0 0.0
    %317 = vmatmul.mubr.f32.gmra.mrb[0].mxu0 %v245
    %v318 = vpop.f32.mrb[0].mxu0
    %v319 = vadd.f32 %v240, %v318
    %v320 = vpop.f32.mrb[0].mxu0
    %321 = vdwg.mxu0
    %vm322 = vcmask 31744
    %323 = vst.msk [vmem:[%s5] sm:$0xff] %vm322, %v314
    %324 = vst.msk [vmem:[%s5 + $0x8] sm:$0xff] %vm322, %v319
    // Predicated region
    $region30: #{tpu_custom_call.1} parent=1 // pred_check
      _
    $region31: #{tpu_custom_call.1} parent=1 // pred_check_branch
      %326 = sbr.rel (0) target = $region33
    $region32: #{tpu_custom_call.1} parent=1 // pred_region
      _
    $region33: #{tpu_custom_call.1} parent=1 // pred_fallthru
      _
    // Predicated region
    $region34: #{tpu_custom_call.1} parent=1 // pred_check
      _
    $region35: #{tpu_custom_call.1} parent=1 // pred_check_branch
      %328 = sbr.rel (0) target = $region37
    $region36: #{tpu_custom_call.1} parent=1 // pred_region
      _
    $region37: #{tpu_custom_call.1} parent=1 // pred_fallthru
      _
    %329 = vsyncpa [#allocation3], 1
    %330 = vsyncpa [#allocation5], 1

</llo_original>
